<compile_context>
chip_gen: v6e
topology: v6e:2x2x1
jax: 0.10.0
libtpu: 0.0.40
codegen_flags: <defaults>
</compile_context>

<pallas_src>
import jax
import jax.numpy as jnp
from jax.experimental import pallas as pl
from jax.experimental.pallas import tpu as pltpu


def _round_up(x, m):
    return (x + m - 1) // m * m


def _dimchange_kernel(x_ref, w_ref, b_ref, o_ref):
    # Single fused affine map: (TB, F) @ (F, O_pad) + (1, O_pad).
    acc = jnp.dot(x_ref[...], w_ref[...], preferred_element_type=jnp.float32)
    o_ref[...] = (acc + b_ref[...]).astype(o_ref.dtype)


def fold_params(w1, b1, w2, b2, weight_dtype=jnp.bfloat16):
    """Fold hidden+predict Linears (no activation between) into one affine map.

    Weights are stored (in, out), i.e. transposed relative to nn.Linear.weight.
    Returns (W12 in `weight_dtype`, b12 in float32)."""
    w1f = w1.astype(jnp.float32)
    w2f = w2.astype(jnp.float32)
    w12 = w1f @ w2f                                        # (F, O)
    b12 = b1.astype(jnp.float32) @ w2f + b2.astype(jnp.float32)  # (O,)
    return w12.astype(weight_dtype), b12


def dimchange_forward(x, w12, b12, *, batch_tile=128):
    """Folded DimChange forward.

    x: (F,) -> returns (O,)   (exact PyTorch module semantics, batch 1), or
       (B, F) -> returns (B, O)  (B independent module forwards).
    """
    squeeze = x.ndim == 1
    x2d = x.reshape(1, -1) if squeeze else x
    B, F = x2d.shape
    Fw, O = w12.shape
    assert Fw == F, (Fw, F)

    # Lane-dense output: pad the output dim to a multiple of 128 lanes.
    O_pad = _round_up(O, 128)
    w_p = jnp.zeros((F, O_pad), w12.dtype).at[:, :O].set(w12)
    b_p = jnp.zeros((1, O_pad), jnp.float32).at[0, :O].set(b12)

    # Sublane-aligned batch tile; batch padded up to a whole number of tiles.
    tb = batch_tile if B > batch_tile else _round_up(B, 8)
    B_pad = _round_up(B, tb)
    x_p = jnp.zeros((B_pad, F), w12.dtype).at[:B].set(x2d.astype(w12.dtype))

    out = pl.pallas_call(
        _dimchange_kernel,
        out_shape=jax.ShapeDtypeStruct((B_pad, O_pad), jnp.float32),
        grid=(B_pad // tb,),
        in_specs=[
            pl.BlockSpec((tb, F), lambda i: (i, 0)),        # x tile per batch step
            pl.BlockSpec((F, O_pad), lambda i: (0, 0)),     # folded weights (resident)
            pl.BlockSpec((1, O_pad), lambda i: (0, 0)),     # folded bias (resident)
        ],
        out_specs=pl.BlockSpec((tb, O_pad), lambda i: (i, 0)),
        compiler_params=pltpu.CompilerParams(
            dimension_semantics=("parallel",)),             # shard batch across TCs (v7x)
    )(x_p, w_p, b_p)

    out = out[:B, :O]
    return out[0] if squeeze else out


def init_params(key, n_feature, n_hidden, n_output):
    """Deterministic init mimicking torch.nn.Linear (uniform +/- 1/sqrt(fan_in)).
    Stored as (in, out) = PyTorch weight transposed, so math is x @ W."""
    k1, k2, k3, k4 = jax.random.split(key, 4)
    bound1 = 1.0 / (n_feature ** 0.5)
    bound2 = 1.0 / (n_hidden ** 0.5)
    w1 = jax.random.uniform(k1, (n_feature, n_hidden), jnp.float32, -bound1, bound1)
    b1 = jax.random.uniform(k2, (n_hidden,), jnp.float32, -bound1, bound1)
    w2 = jax.random.uniform(k3, (n_hidden, n_output), jnp.float32, -bound2, bound2)
    b2 = jax.random.uniform(k4, (n_output,), jnp.float32, -bound2, bound2)
    return w1, b1, w2, b2


if __name__ == "__main__":
    n_feature, n_hidden, n_output = 16, 32, 8

    key = jax.random.PRNGKey(0)
    kx, kb, kp = jax.random.split(key, 3)
    x = jax.random.normal(kx, (n_feature,), jnp.float32)          # module forward
    xb = jax.random.normal(kb, (4, n_feature), jnp.float32)       # batched usage
    w1, b1, w2, b2 = init_params(kp, n_feature, n_hidden, n_output)

    # One-time parameter fold (done at init, outside the kernel).
    w12, b12 = fold_params(w1, b1, w2, b2, weight_dtype=jnp.bfloat16)

    out = jax.block_until_ready(dimchange_forward(x, w12, b12))
    out_b = jax.block_until_ready(dimchange_forward(xb, w12, b12))

    # Strict reference: same folded (bf16-rounded) weights, plain jnp math.
    w12_f32 = w12.astype(jnp.float32)
    x_r = x.astype(jnp.bfloat16).astype(jnp.float32)
    xb_r = xb.astype(jnp.bfloat16).astype(jnp.float32)
    ref_strict = x_r @ w12_f32 + b12
    ref_strict_b = xb_r @ w12_f32 + b12

    # Loose reference: original unfused full-f32 PyTorch semantics.
    h = x @ w1 + b1
    ref_torch = h.reshape(-1) @ w2 + b2
    ref_torch_b = (xb @ w1 + b1) @ w2 + b2

    assert out.shape == (n_output,)
    assert out_b.shape == (4, n_output)
    assert jnp.allclose(out, ref_strict, atol=1e-4, rtol=1e-4)
    assert jnp.allclose(out_b, ref_strict_b, atol=1e-4, rtol=1e-4)
    assert jnp.allclose(out, ref_torch, atol=5e-2, rtol=5e-2)
    assert jnp.allclose(out_b, ref_torch_b, atol=5e-2, rtol=5e-2)

    print("KERNEL_OK")
</pallas_src>

<mosaic_0001>
module attributes {stable_mosaic.version = 11 : i64} {
  func.func @_dimchange_kernel(%arg0: i32, %arg1: memref<8x16xbf16, #tpu.memory_space<vmem>>, %arg2: memref<16x128xbf16, #tpu.memory_space<vmem>>, %arg3: memref<1x128xf32, #tpu.memory_space<vmem>>, %arg4: memref<8x128xf32, #tpu.memory_space<vmem>>) attributes {dimension_semantics = [#tpu.dimension_semantics<parallel>], iteration_bounds = array<i64: 1>, scalar_prefetch = 0 : i64, scratch_operands = 0 : i64, tpu.core_type = #tpu.core_type<tc>, window_params = [{transform_indices = @transform_0, window_bounds = array<i64: 8, 16>}, {pipeline_mode = #tpu.pipeline_mode<synchronous>, transform_indices = @transform_1, window_bounds = array<i64: 16, 128>}, {pipeline_mode = #tpu.pipeline_mode<synchronous>, transform_indices = @transform_2, window_bounds = array<i64: 1, 128>}, {transform_indices = @transform_3, window_bounds = array<i64: 8, 128>}]} {
    %c0 = arith.constant 0 : index
    %c0_0 = arith.constant 0 : index
    %0 = vector.load %arg1[%c0, %c0_0] : memref<8x16xbf16, #tpu.memory_space<vmem>>, vector<8x16xbf16>
    %c0_1 = arith.constant 0 : index
    %c0_2 = arith.constant 0 : index
    %1 = vector.load %arg2[%c0_1, %c0_2] : memref<16x128xbf16, #tpu.memory_space<vmem>>, vector<16x128xbf16>
    %cst = arith.constant dense<0.000000e+00> : vector<8x128xf32>
    %2 = tpu.matmul %0, %1, %cst {dimension_numbers = #tpu.dot_dimension_numbers<[1], [0], [0], [1], [0, 0, 1, 1], [], []>} : vector<8x16xbf16>, vector<16x128xbf16>, vector<8x128xf32> -> vector<8x128xf32>
    %c0_3 = arith.constant 0 : index
    %c0_4 = arith.constant 0 : index
    %3 = vector.load %arg3[%c0_3, %c0_4] : memref<1x128xf32, #tpu.memory_space<vmem>>, vector<1x128xf32>
    %4 = vector.broadcast %3 : vector<1x128xf32> to vector<8x128xf32>
    %5 = arith.addf %2, %4 : vector<8x128xf32>
    %c0_5 = arith.constant 0 : index
    %c0_6 = arith.constant 0 : index
    %6 = vector.load %arg4[%c0_5, %c0_6] : memref<8x128xf32, #tpu.memory_space<vmem>>, vector<8x128xf32>
    tpu.vector_store %arg4[%c0_5, %c0_6], %5 {strides = array<i32>} : memref<8x128xf32, #tpu.memory_space<vmem>>, vector<8x128xf32>,
    return
  }
  func.func @transform_0(%arg0: i32) -> (i32, i32) {
    %c0_i32 = arith.constant 0 : i32
    %c0_i32_0 = arith.constant 0 : i32
    return %arg0, %c0_i32 : i32, i32
  }
  func.func @transform_1(%arg0: i32) -> (i32, i32) {
    %c0_i32 = arith.constant 0 : i32
    %c0_i32_0 = arith.constant 0 : i32
    %c0_i32_1 = arith.constant 0 : i32
    return %c0_i32, %c0_i32_0 : i32, i32
  }
  func.func @transform_2(%arg0: i32) -> (i32, i32) {
    %c0_i32 = arith.constant 0 : i32
    %c0_i32_0 = arith.constant 0 : i32
    %c0_i32_1 = arith.constant 0 : i32
    return %c0_i32, %c0_i32_0 : i32, i32
  }
  func.func @transform_3(%arg0: i32) -> (i32, i32) {
    %c0_i32 = arith.constant 0 : i32
    %c0_i32_0 = arith.constant 0 : i32
    return %arg0, %c0_i32 : i32, i32
  }
}

</mosaic_0001>

<llo_original>
// kernel: tpu_custom_call.1
$region0: #{tpu_custom_call.1}
  #allocation0 [shape = 'u32[]', space=smem, size = 0x4, offset = 0x4, fixed_abs, tag = 'smem constant byte address 0x4 - core index']
  #allocation1 [shape = 'u32[144,128]{1,0:T(1,128)}', space=vmem, size = 0x12000, scoped, tag = 'internal scratch']
  %s0 = inlined_call_operand.hbm [shape: bf16[8,16], index: 0, kind: input, shape index: {}]
  %s1 = inlined_call_operand.hbm [shape: bf16[16,128], index: 1, kind: input, shape index: {}]
  %s2 = inlined_call_operand.vmem [shape: f32[1,128], index: 2, kind: input, shape index: {}]
  %s3 = inlined_call_operand.hbm [shape: f32[8,128], index: 3, kind: output, shape index: {}]
  %s4 = sld [smem:[#allocation0]]
  $region30: #{tpu_custom_call.1} parent=0
    _
  %s6 = ssub.s32 1, %s4
  %s7 = scalar_select 0, %s6, %s4
  $region1: #{tpu_custom_call.1} parent=0
    #allocation2 [shape = 'u8[2048]{0}', space=vmem, size = 0x800, scoped, tag = 'input window, operand 0, single buffered']
    #allocation3 [shape = 's32[1]{0}', space=sflag, size = 0x4, scoped, tag = 'scoped memory for tpu_custom_call.1']
    #allocation4 [shape = 's32[1]{0}', space=sflag, size = 0x4, scoped, tag = 'scoped memory for tpu_custom_call.1']
    #allocation5 [shape = 'u8[4096]{0}', space=vmem, size = 0x1000, scoped, tag = 'input window, operand 1, single buffered']
    #allocation6 [shape = 's32[1]{0}', space=sflag, size = 0x4, scoped, tag = 'scoped memory for tpu_custom_call.1']
    #allocation7 [shape = 'u8[4096]{0}', space=vmem, size = 0x1000, scoped, tag = 'output window, operand 0, single buffered']
    %8 = vsyncpa [#allocation3], 0
    %9 = vsyncpa [#allocation6], 0
    %10 = vsyncpa [#allocation4], 0
    // Predicated region
    $region2: #{tpu_custom_call.1} parent=1 // pred_check
      _
    $region3: #{tpu_custom_call.1} parent=1 // pred_check_branch
      %12 = sbr.rel (0) target = $region5
    $region4: #{tpu_custom_call.1} parent=1 // pred_region
      %s14 = ssub.s32 64, 64
      %15 = vsyncadd [#allocation3], %s14
      %s17 = sshll.u32 [#allocation2], 4
      %s18 = int_to_ptr.vmem [resolvable:$true] %s17
      %20 = dma.hbm_to_vmem [thread:$0]  %s0, 64, %s18, [#allocation3]
    $region5: #{tpu_custom_call.1} parent=1 // pred_fallthru
      _
    // Predicated region
    $region6: #{tpu_custom_call.1} parent=1 // pred_check
      _
    $region7: #{tpu_custom_call.1} parent=1 // pred_check_branch
      %22 = sbr.rel (0) target = $region9
    $region8: #{tpu_custom_call.1} parent=1 // pred_region
      %s24 = ssub.s32 128, 128
      %25 = vsyncadd [#allocation6], %s24
      %s26 = sshll.u32 [#allocation5], 4
      %s27 = int_to_ptr.vmem [resolvable:$true] %s26
      %32 = dma.hbm_to_vmem [thread:$0]  %s1, 128, %s27, [#allocation6], 64, 64, 4
    $region9: #{tpu_custom_call.1} parent=1 // pred_fallthru
      _
    // Predicated region
    $region10: #{tpu_custom_call.1} parent=1 // pred_check
      _
    $region11: #{tpu_custom_call.1} parent=1 // pred_check_branch
      %34 = sbr.rel (0) target = $region13
    $region12: #{tpu_custom_call.1} parent=1 // pred_region
      _
    $region13: #{tpu_custom_call.1} parent=1 // pred_fallthru
      _
    // Predicated region
    $region14: #{tpu_custom_call.1} parent=1 // pred_check
      _
    $region15: #{tpu_custom_call.1} parent=1 // pred_check_branch
      %36 = sbr.rel (0) target = $region17
    $region16: #{tpu_custom_call.1} parent=1 // pred_region
      %37 = dma.done [#allocation3], 64
    $region17: #{tpu_custom_call.1} parent=1 // pred_fallthru
      _
    // Predicated region
    $region18: #{tpu_custom_call.1} parent=1 // pred_check
      _
    $region19: #{tpu_custom_call.1} parent=1 // pred_check_branch
      %39 = sbr.rel (0) target = $region21
    $region20: #{tpu_custom_call.1} parent=1 // pred_region
      %40 = dma.done [#allocation6], 128
    $region21: #{tpu_custom_call.1} parent=1 // pred_fallthru
      _
    %v42 = vld [vmem:[#allocation2] sm:$0xf]
    %v43 = vld [vmem:[#allocation5] sm:$0xf]
    %v44 = vld [vmem:[#allocation5 + $0x4] sm:$0xf]
    %v45 = vld [vmem:[%s2] sm:$0x1]
    %v47 = vlaneseq
    %v48 = vshrl.u32 %v47, 7
    %v49 = vsub.s32 0, %v48
    %v50 = vrot.slane %v45, %v49
    %v54 = vunpack.c.l.b16 %v43
    %v55 = vunpack.c.l.b16 %v44
    %v56 = vpack.c.b16 %v55, %v54
    %vm58 = vcmask 130048
    %v60 = vsel %vm58, %v42, 0
    %62 = vmatprep.subr.bf16.mxu0 0
    %63 = vmatpush1.bf16.msra.mxu0 0
    %64 = vmatprep.subr.bf16.mxu0 0
    %65 = vmatpush1.bf16.msra.mxu0 0
    %66 = vmatprep.subr.bf16.mxu0 0
    %67 = vmatpush1.bf16.msra.mxu0 0
    %68 = vmatprep.subr.bf16.mxu0 0
    %69 = vmatpush1.bf16.msra.mxu0 0
    %70 = vmatprep.subr.bf16.mxu0 0
    %71 = vmatpush1.bf16.msra.mxu0 0
    %72 = vmatprep.subr.bf16.mxu0 0
    %73 = vmatpush1.bf16.msra.mxu0 0
    %74 = vmatprep.subr.bf16.mxu0 0
    %75 = vmatpush1.bf16.msra.mxu0 0
    %76 = vmatprep.subr.bf16.mxu0 0
    %77 = vmatpush1.bf16.msra.mxu0 %v56
    %78 = vmatprep.subr.bf16.mxu0 0
    %79 = vmatpush2.bf16.msra.mxu0 0
    %80 = vmatprep.subr.bf16.mxu0 0
    %81 = vmatpush2.bf16.msra.mxu0 0
    %82 = vmatprep.subr.bf16.mxu0 0
    %83 = vmatpush2.bf16.msra.mxu0 0
    %84 = vmatprep.subr.bf16.mxu0 0
    %85 = vmatpush2.bf16.msra.mxu0 0
    %86 = vmatprep.subr.bf16.mxu0 0
    %87 = vmatpush2.bf16.msra.mxu0 0
    %88 = vmatprep.subr.bf16.mxu0 0
    %89 = vmatpush2.bf16.msra.mxu0 0
    %90 = vmatprep.subr.bf16.mxu0 0
    %91 = vmatpush2.bf16.msra.mxu0 0
    %92 = vmatprep.subr.bf16.mxu0 0
    %93 = vmatpush2.bf16.msra.mxu0 0
    %94 = vmatprep.mubr.bf16.mxu0 0
    %95 = vmatmul.mubr.bf16.gmra.mxu0 %v60
    %v96 = vpop.f32.mrf.mxu0
    %v97 = vadd.f32 %v50, %v96
    %v98 = vpop.f32.mrf.mxu0
    %v99 = vpop.f32.mrf.mxu0
    %v100 = vpop.f32.mrf.mxu0
    %101 = vdwg.mxu0
    %102 = vst [vmem:[#allocation7] sm:$0xff] %v97
    // Predicated region
    $region22: #{tpu_custom_call.1} parent=1 // pred_check
      _
    $region23: #{tpu_custom_call.1} parent=1 // pred_check_branch
      %104 = sbr.rel (0) target = $region25
    $region24: #{tpu_custom_call.1} parent=1 // pred_region
      %s106 = ssub.s32 128, 128
      %107 = vsyncadd [#allocation4], %s106
      %s109 = sshll.u32 [#allocation7], 4
      %s110 = int_to_ptr.vmem [resolvable:$true] %s109
      %112 = dma.vmem_to_hbm [thread:$0]  %s110, 128, %s3, [#allocation4]
    $region25: #{tpu_custom_call.1} parent=1 // pred_fallthru
      _
    // Predicated region
    $region26: #{tpu_custom_call.1} parent=1 // pred_check
      _
    $region27: #{tpu_custom_call.1} parent=1 // pred_check_branch
      %114 = sbr.rel (0) target = $region29
    $region28: #{tpu_custom_call.1} parent=1 // pred_region
      %115 = dma.done [#allocation4], 128
    $region29: #{tpu_custom_call.1} parent=1 // pred_fallthru
      _
    %116 = vsyncpa [#allocation3], 1
    %117 = vsyncpa [#allocation6], 1
    %118 = vsyncpa [#allocation4], 1

</llo_original>
